<compile_context>
chip_gen: v5e
topology: v5e:2x2
jax: 0.10.0
libtpu: 0.0.40
codegen_flags: <defaults>
</compile_context>

<pallas_src>
import functools
import numpy as np
import jax
import jax.numpy as jnp
from jax import lax
from jax.experimental import pallas as pl
from jax.experimental.pallas import tpu as pltpu


_CONTRACT_LAST = (((1,), (1,)), ((), ()))   # contract last dims of both operands


@functools.lru_cache(maxsize=None)
def _vmem_limit_bytes():
    """Generation-aware VMEM budget: ~100 MiB on v5e/v6e (128 MiB physical per
    TensorCore), conservative 48 MiB otherwise (v7x has 64 MiB per TC)."""
    kind = ""
    try:
        kind = jax.devices()[0].device_kind.lower()
    except Exception:
        pass
    if ("v5" in kind) or ("v6" in kind):
        return 100 * 1024 * 1024
    return 48 * 1024 * 1024


# ----------------------------------------------------------------------------
# Tiled linear projection:  y = x @ W^T + b          (W stored [Dout, Din])
# ----------------------------------------------------------------------------
def _linear_kernel(x_ref, w_ref, b_ref, o_ref):
    # bf16 MXU operands, f32 accumulation.
    y = lax.dot_general(x_ref[...].astype(jnp.bfloat16),
                        w_ref[...].astype(jnp.bfloat16),
                        _CONTRACT_LAST,
                        preferred_element_type=jnp.float32)
    o_ref[...] = (y + b_ref[...].astype(jnp.float32)).astype(o_ref.dtype)


def linear(x, w, b, *, tm=512, tn=512, out_dtype=None):
    """x: [M, Din], w: [Dout, Din], b: [Dout] -> [M, Dout]."""
    M, Din = x.shape
    Dout = w.shape[0]
    out_dtype = x.dtype if out_dtype is None else out_dtype
    tm = M if M <= tm else tm          # full dim when small (keeps (8,128) rule happy)
    tn = Dout if Dout <= tn else tn
    grid = (pl.cdiv(M, tm), pl.cdiv(Dout, tn))
    return pl.pallas_call(
        _linear_kernel,
        out_shape=jax.ShapeDtypeStruct((M, Dout), out_dtype),
        grid=grid,
        in_specs=[
            pl.BlockSpec((tm, Din), lambda i, j: (i, 0)),
            pl.BlockSpec((tn, Din), lambda i, j: (j, 0)),
            pl.BlockSpec((1, tn), lambda i, j: (0, j)),
        ],
        out_specs=pl.BlockSpec((tm, tn), lambda i, j: (i, j)),
        compiler_params=pltpu.CompilerParams(
            dimension_semantics=("parallel", "parallel"),
            vmem_limit_bytes=_vmem_limit_bytes()),
    )(x, w, b.reshape(1, Dout))


# ----------------------------------------------------------------------------
# Attention core: heads fused in the channel dim, flash-style Lkv reduction
# ----------------------------------------------------------------------------
def _attention_kernel(q_ref, k_ref, v_ref, o_ref,
                      m_scratch, l_scratch, acc_scratch,
                      *, heads, cqk, cv, lkv, tkv, mask_kv):
    ki = pl.program_id(3)
    nk = pl.num_programs(3)

    @pl.when(ki == 0)
    def _init():
        m_scratch[...] = jnp.full(m_scratch.shape, -jnp.inf, m_scratch.dtype)
        l_scratch[...] = jnp.zeros(l_scratch.shape, l_scratch.dtype)
        acc_scratch[...] = jnp.zeros(acc_scratch.shape, acc_scratch.dtype)

    # bf16 MXU operands (f32 accumulation).  The 1/sqrt(Cqk) scale is folded
    # into the q-projection weights, so no per-kv-step rescale of the resident
    # q block is needed here.
    q = q_ref[0].astype(jnp.bfloat16)        # (tq, heads*Cqk)
    k = k_ref[0].astype(jnp.bfloat16)        # (tkv, heads*Cqk)
    v = v_ref[0].astype(jnp.bfloat16)        # (tkv, heads*Cv)

    if mask_kv:
        kv_valid = (lax.broadcasted_iota(jnp.int32, (q.shape[0], tkv), 1)
                    < (lkv - ki * tkv))

    for h in range(heads):                   # static unroll over heads in this group
        qh = q[:, h * cqk:(h + 1) * cqk]
        kh = k[:, h * cqk:(h + 1) * cqk]
        vh = v[:, h * cv:(h + 1) * cv]

        # scores: contract the per-head channel (last dim of both) -> no transpose
        s = lax.dot_general(qh, kh, _CONTRACT_LAST,
                            preferred_element_type=jnp.float32)     # (tq, tkv) f32
        if mask_kv:
            s = jnp.where(kv_valid, s, -jnp.inf)

        m_prev = m_scratch[h]                                        # (tq, 1) f32
        m_new = jnp.maximum(m_prev, jnp.max(s, axis=-1, keepdims=True))
        alpha = jnp.exp(m_prev - m_new)
        # TODO(synk): on v6e/v7x the exp could run in bf16 (bf16 EUP); kept f32
        # so v5e (no bf16 VPU/EUP) stays correct and fast on one code path.
        p = jnp.exp(s - m_new)

        l_scratch[h] = alpha * l_scratch[h] + jnp.sum(p, axis=-1, keepdims=True)
        acc_scratch[h] = alpha * acc_scratch[h] + jnp.dot(
            p.astype(jnp.bfloat16), vh, preferred_element_type=jnp.float32)
        m_scratch[h] = m_new

    @pl.when(ki == nk - 1)
    def _finalize():
        # Per-head stores at static lane offsets: no H-way concatenate /
        # relayout of the whole (tq, heads*Cv) tile.
        for h in range(heads):
            o_ref[0, :, h * cv:(h + 1) * cv] = (
                acc_scratch[h] * pl.reciprocal(l_scratch[h], approx=True)
            ).astype(o_ref.dtype)


def _pick_head_group(num_heads, cqk, cv):
    """Heads processed per kernel invocation.  For many heads, slice the fused
    channel dim into 128-aligned head groups (bounds the unrolled head loop's
    VMEM/vreg live range, adds parallel blocks for v7x's 2 TensorCores)."""
    if num_heads < 8:
        return num_heads
    for hg in range(1, num_heads):
        if (num_heads % hg == 0
                and (hg * cqk) % 128 == 0 and (hg * cv) % 128 == 0):
            return hg
    return num_heads        # fall back to all heads fused (block == full channel dim)


def attention_core(qp, kp, vp, num_heads, *, tq=256, tkv=512):
    """qp: [N,Lq,H*Cqk], kp: [N,Lkv,H*Cqk], vp: [N,Lkv,H*Cv] -> [N,Lq,H*Cv]."""
    N, Lq, QKd = qp.shape
    Lkv = kp.shape[1]
    Vd = vp.shape[2]
    H = num_heads
    Cqk = QKd // H
    Cv = Vd // H

    hg = _pick_head_group(H, Cqk, Cv)
    n_hg = H // hg

    # kv tiling: fixed tile + zero-pad/mask of the tail.  Never falls back to
    # the whole Lkv per block -> bounded VMEM working set (v7x: 64 MiB).
    tkv = min(tkv, Lkv)
    nk = pl.cdiv(Lkv, tkv)
    lkv_pad = nk * tkv
    mask_kv = lkv_pad != Lkv
    if mask_kv:
        pad = lkv_pad - Lkv
        kp = jnp.pad(kp, ((0, 0), (0, pad), (0, 0)))
        vp = jnp.pad(vp, ((0, 0), (0, pad), (0, 0)))

    # q tiling; give v7x's two TensorCores at least two parallel blocks.
    tq = min(tq, Lq)
    while N * n_hg * pl.cdiv(Lq, tq) < 2 and tq >= 256 and tq % 16 == 0:
        tq //= 2
    nq = pl.cdiv(Lq, tq)

    kernel = functools.partial(_attention_kernel, heads=hg, cqk=Cqk, cv=Cv,
                               lkv=Lkv, tkv=tkv, mask_kv=mask_kv)
    return pl.pallas_call(
        kernel,
        out_shape=jax.ShapeDtypeStruct((N, Lq, Vd), qp.dtype),
        grid=(N, n_hg, nq, nk),
        in_specs=[
            pl.BlockSpec((1, tq, hg * Cqk), lambda n, g, qi, ki: (n, qi, g)),
            pl.BlockSpec((1, tkv, hg * Cqk), lambda n, g, qi, ki: (n, ki, g)),
            pl.BlockSpec((1, tkv, hg * Cv), lambda n, g, qi, ki: (n, ki, g)),
        ],
        out_specs=pl.BlockSpec((1, tq, hg * Cv), lambda n, g, qi, ki: (n, qi, g)),
        scratch_shapes=[
            pltpu.VMEM((hg, tq, 1), jnp.float32),    # running max (lane-padded; small)
            pltpu.VMEM((hg, tq, 1), jnp.float32),    # running denom
            pltpu.VMEM((hg, tq, Cv), jnp.float32),   # running weighted sum
        ],
        compiler_params=pltpu.CompilerParams(
            dimension_semantics=("parallel", "parallel", "parallel", "arbitrary"),
            vmem_limit_bytes=_vmem_limit_bytes()),
    )(qp, kp, vp)


# ----------------------------------------------------------------------------
# Full forward pass (glue in plain JAX; hot paths in Pallas)
# ----------------------------------------------------------------------------
def attention_forward(params, q, k, v, num_heads):
    N, Lq, _ = q.shape
    Lkv = k.shape[1]
    H = num_heads
    Cqk = params["wq"].shape[0] // H
    scale = 1.0 / float(np.sqrt(Cqk))

    # Fold the 1/sqrt(Cqk) scale into the q projection and pre-cast weights to
    # bf16 so the linear kernels stream half the weight bytes from HBM.
    wq = (params["wq"] * scale).astype(jnp.bfloat16)
    bq = params["bq"] * scale
    wk = params["wk"].astype(jnp.bfloat16)
    wv = params["wv"].astype(jnp.bfloat16)
    wo = params["wo"].astype(jnp.bfloat16)

    # Projections: bf16 activations out of q/k/v halve HBM traffic into the
    # attention core; the final projection restores the input dtype.
    qp = linear(q.reshape(N * Lq, -1), wq, bq,
                out_dtype=jnp.bfloat16).reshape(N, Lq, -1)
    kp = linear(k.reshape(N * Lkv, -1), wk, params["bk"],
                out_dtype=jnp.bfloat16).reshape(N, Lkv, -1)
    vp = linear(v.reshape(N * Lkv, -1), wv, params["bv"],
                out_dtype=jnp.bfloat16).reshape(N, Lkv, -1)

    # heads stay fused in the channel dim: no transpose(0,2,1,3) round-trips
    mix = attention_core(qp, kp, vp, H)                     # [N, Lq, H*Cv] bf16

    out = linear(mix.reshape(N * Lq, -1), wo, params["bo"], out_dtype=q.dtype)
    return out.reshape(N, Lq, -1)


# ----------------------------------------------------------------------------
# Deterministic parameter init (xavier_uniform_ weights, zero bias)
# ----------------------------------------------------------------------------
def xavier_uniform(key, out_dim, in_dim):
    limit = float(np.sqrt(6.0 / (in_dim + out_dim)))
    return jax.random.uniform(key, (out_dim, in_dim), jnp.float32, -limit, limit)


def init_params(key, q_in, k_in, v_in, qk_proj, v_proj, out_dim):
    ks = jax.random.split(key, 4)
    return {
        "wq": xavier_uniform(ks[0], qk_proj, q_in), "bq": jnp.zeros((qk_proj,), jnp.float32),
        "wk": xavier_uniform(ks[1], qk_proj, k_in), "bk": jnp.zeros((qk_proj,), jnp.float32),
        "wv": xavier_uniform(ks[2], v_proj, v_in),  "bv": jnp.zeros((v_proj,), jnp.float32),
        "wo": xavier_uniform(ks[3], out_dim, v_proj), "bo": jnp.zeros((out_dim,), jnp.float32),
    }


# ----------------------------------------------------------------------------
# Pure-JAX f32 reference (mirrors the PyTorch forward) for correctness check
# ----------------------------------------------------------------------------
def reference_forward(params, q, k, v, num_heads):
    N, Lq, _ = q.shape
    Lkv = k.shape[1]
    H = num_heads
    qp = q @ params["wq"].T + params["bq"]
    kp = k @ params["wk"].T + params["bk"]
    vp = v @ params["wv"].T + params["bv"]
    Cqk = qp.shape[-1] // H
    Cv = vp.shape[-1] // H
    qh = qp.reshape(N, Lq, H, Cqk)
    kh = kp.reshape(N, Lkv, H, Cqk)
    vh = vp.reshape(N, Lkv, H, Cv)
    aff = jnp.einsum("nqhc,nkhc->nqkh", qh / np.sqrt(Cqk), kh)
    aff = jax.nn.softmax(aff, axis=-2)
    mix = jnp.einsum("nqlh,nlhc->nqhc", aff, vh)
    return mix.reshape(N, Lq, H * Cv) @ params["wo"].T + params["bo"]


if __name__ == "__main__":
    # Small shapes consistent with the module's forward.
    N, Lq, Lkv = 2, 8, 8
    q_in_dim, k_in_dim, v_in_dim = 32, 32, 32
    qk_proj_dim, v_proj_dim, out_dim = 32, 32, 32
    num_heads = 4

    key = jax.random.PRNGKey(0)
    kp_, kq_, kk_, kv_ = jax.random.split(key, 4)
    params = init_params(kp_, q_in_dim, k_in_dim, v_in_dim,
                         qk_proj_dim, v_proj_dim, out_dim)

    q = jax.random.normal(kq_, (N, Lq, q_in_dim), jnp.float32)
    k = jax.random.normal(kk_, (N, Lkv, k_in_dim), jnp.float32)
    v = jax.random.normal(kv_, (N, Lkv, v_in_dim), jnp.float32)

    out = attention_forward(params, q, k, v, num_heads)
    out = jax.block_until_ready(out)

    ref = reference_forward(params, q, k, v, num_heads)
    # bf16 MXU operands + approx reciprocal -> relaxed tolerance vs f32 ref.
    np.testing.assert_allclose(np.asarray(out, dtype=np.float32),
                               np.asarray(ref), rtol=5e-2, atol=5e-2)

    print("KERNEL_OK")
</pallas_src>

<mosaic_0001>
module attributes {stable_mosaic.version = 11 : i64} {
  func.func @_linear_kernel(%arg0: i32, %arg1: i32, %arg2: memref<16x32xf32, #tpu.memory_space<vmem>>, %arg3: memref<32x32xbf16, #tpu.memory_space<vmem>>, %arg4: memref<1x32xf32, #tpu.memory_space<vmem>>, %arg5: memref<16x32xbf16, #tpu.memory_space<vmem>>) attributes {dimension_semantics = [#tpu.dimension_semantics<parallel>, #tpu.dimension_semantics<parallel>], iteration_bounds = array<i64: 1, 1>, scalar_prefetch = 0 : i64, scratch_operands = 0 : i64, tpu.core_type = #tpu.core_type<tc>, window_params = [{transform_indices = @transform_0, window_bounds = array<i64: 16, 32>}, {transform_indices = @transform_1, window_bounds = array<i64: 32, 32>}, {transform_indices = @transform_2, window_bounds = array<i64: 1, 32>}, {transform_indices = @transform_3, window_bounds = array<i64: 16, 32>}]} {
    %c0 = arith.constant 0 : index
    %c0_0 = arith.constant 0 : index
    %0 = vector.load %arg2[%c0, %c0_0] : memref<16x32xf32, #tpu.memory_space<vmem>>, vector<16x32xf32>
    %1 = arith.truncf %0 : vector<16x32xf32> to vector<16x32xbf16>
    %c0_1 = arith.constant 0 : index
    %c0_2 = arith.constant 0 : index
    %2 = vector.load %arg3[%c0_1, %c0_2] : memref<32x32xbf16, #tpu.memory_space<vmem>>, vector<32x32xbf16>
    %cst = arith.constant dense<0.000000e+00> : vector<16x32xf32>
    %3 = tpu.matmul %1, %2, %cst {dimension_numbers = #tpu.dot_dimension_numbers<[1], [1], [0], [0], [0, 0, 1, 0], [], []>} : vector<16x32xbf16>, vector<32x32xbf16>, vector<16x32xf32> -> vector<16x32xf32>
    %c0_3 = arith.constant 0 : index
    %c0_4 = arith.constant 0 : index
    %4 = vector.load %arg4[%c0_3, %c0_4] : memref<1x32xf32, #tpu.memory_space<vmem>>, vector<1x32xf32>
    %5 = vector.broadcast %4 : vector<1x32xf32> to vector<16x32xf32>
    %6 = arith.addf %3, %5 : vector<16x32xf32>
    %7 = arith.truncf %6 : vector<16x32xf32> to vector<16x32xbf16>
    %c0_5 = arith.constant 0 : index
    %c0_6 = arith.constant 0 : index
    %8 = vector.load %arg5[%c0_5, %c0_6] : memref<16x32xbf16, #tpu.memory_space<vmem>>, vector<16x32xbf16>
    tpu.vector_store %arg5[%c0_5, %c0_6], %7 {strides = array<i32>} : memref<16x32xbf16, #tpu.memory_space<vmem>>, vector<16x32xbf16>,
    return
  }
  func.func @transform_0(%arg0: i32, %arg1: i32) -> (i32, i32) {
    %c0_i32 = arith.constant 0 : i32
    %c0_i32_0 = arith.constant 0 : i32
    return %arg0, %c0_i32 : i32, i32
  }
  func.func @transform_1(%arg0: i32, %arg1: i32) -> (i32, i32) {
    %c0_i32 = arith.constant 0 : i32
    %c0_i32_0 = arith.constant 0 : i32
    return %arg1, %c0_i32 : i32, i32
  }
  func.func @transform_2(%arg0: i32, %arg1: i32) -> (i32, i32) {
    %c0_i32 = arith.constant 0 : i32
    %c0_i32_0 = arith.constant 0 : i32
    return %c0_i32, %arg1 : i32, i32
  }
  func.func @transform_3(%arg0: i32, %arg1: i32) -> (i32, i32) {
    %c0_i32 = arith.constant 0 : i32
    return %arg0, %arg1 : i32, i32
  }
}

</mosaic_0001>

<llo_original>
// kernel: tpu_custom_call.1
$region0: #{tpu_custom_call.1}
  #allocation0 [shape = 'u32[]', space=smem, size = 0x4, offset = 0x4, fixed_abs, tag = 'smem constant byte address 0x4 - core index']
  #allocation1 [shape = 'u32[72,128]{1,0:T(1,128)}', space=vmem, size = 0x9000, scoped, tag = 'internal scratch']
  %s0 = inlined_call_operand.hbm [shape: f32[16,32], index: 0, kind: input, shape index: {}]
  %s1 = inlined_call_operand.hbm [shape: bf16[32,32], index: 1, kind: input, shape index: {}]
  %s2 = inlined_call_operand.vmem [shape: f32[1,32], index: 2, kind: input, shape index: {}]
  %s3 = inlined_call_operand.hbm [shape: bf16[16,32], index: 3, kind: output, shape index: {}]
  %s4 = sld [smem:[#allocation0]]
  $region30: #{tpu_custom_call.1} parent=0
    _
  %s6 = ssub.s32 1, %s4
  %s7 = scalar_select 0, %s6, %s4
  $region1: #{tpu_custom_call.1} parent=0
    #allocation2 [shape = 'u8[8192]{0}', space=vmem, size = 0x2000, scoped, tag = 'input window, operand 0, single buffered']
    #allocation3 [shape = 's32[1]{0}', space=sflag, size = 0x4, scoped, tag = 'scoped memory for tpu_custom_call.1']
    #allocation4 [shape = 's32[1]{0}', space=sflag, size = 0x4, scoped, tag = 'scoped memory for tpu_custom_call.1']
    #allocation5 [shape = 'u8[8192]{0}', space=vmem, size = 0x2000, scoped, tag = 'input window, operand 1, single buffered']
    #allocation6 [shape = 's32[1]{0}', space=sflag, size = 0x4, scoped, tag = 'scoped memory for tpu_custom_call.1']
    #allocation7 [shape = 'u8[4096]{0}', space=vmem, size = 0x1000, scoped, tag = 'output window, operand 0, single buffered']
    %8 = vsyncpa [#allocation3], 0
    %9 = vsyncpa [#allocation6], 0
    %10 = vsyncpa [#allocation4], 0
    // Predicated region
    $region2: #{tpu_custom_call.1} parent=1 // pred_check
      _
    $region3: #{tpu_custom_call.1} parent=1 // pred_check_branch
      %12 = sbr.rel (0) target = $region5
    $region4: #{tpu_custom_call.1} parent=1 // pred_region
      %14 = vsyncadd [#allocation3], 0
      %s15 = sshll.u32 %s0, 4
      %s16 = int_to_ptr.hbm [resolvable:$true] %s15
      %s17 = sshll.u32 [#allocation2], 4
      %s18 = int_to_ptr.vmem [resolvable:$true] %s17
      %23 = dma.hbm_to_vmem [thread:$0]  %s16, 256, %s18, [#allocation3], 128, 128, 8
    $region5: #{tpu_custom_call.1} parent=1 // pred_fallthru
      _
    // Predicated region
    $region6: #{tpu_custom_call.1} parent=1 // pred_check
      _
    $region7: #{tpu_custom_call.1} parent=1 // pred_check_branch
      %25 = sbr.rel (0) target = $region9
    $region8: #{tpu_custom_call.1} parent=1 // pred_region
      %27 = vsyncadd [#allocation6], 0
      %s28 = sshll.u32 %s1, 4
      %s29 = int_to_ptr.hbm [resolvable:$true] %s28
      %s30 = sshll.u32 [#allocation5], 4
      %s31 = int_to_ptr.vmem [resolvable:$true] %s30
      %36 = dma.hbm_to_vmem [thread:$0]  %s29, 256, %s31, [#allocation6], 64, 64, 4
    $region9: #{tpu_custom_call.1} parent=1 // pred_fallthru
      _
    // Predicated region
    $region10: #{tpu_custom_call.1} parent=1 // pred_check
      _
    $region11: #{tpu_custom_call.1} parent=1 // pred_check_branch
      %38 = sbr.rel (0) target = $region13
    $region12: #{tpu_custom_call.1} parent=1 // pred_region
      _
    $region13: #{tpu_custom_call.1} parent=1 // pred_fallthru
      _
    // Predicated region
    $region14: #{tpu_custom_call.1} parent=1 // pred_check
      _
    $region15: #{tpu_custom_call.1} parent=1 // pred_check_branch
      %40 = sbr.rel (0) target = $region17
    $region16: #{tpu_custom_call.1} parent=1 // pred_region
      %42 = dma.done [#allocation3], 256
    $region17: #{tpu_custom_call.1} parent=1 // pred_fallthru
      _
    // Predicated region
    $region18: #{tpu_custom_call.1} parent=1 // pred_check
      _
    $region19: #{tpu_custom_call.1} parent=1 // pred_check_branch
      %44 = sbr.rel (0) target = $region21
    $region20: #{tpu_custom_call.1} parent=1 // pred_region
      %46 = dma.done [#allocation6], 256
    $region21: #{tpu_custom_call.1} parent=1 // pred_fallthru
      _
    %v48 = vld [vmem:[#allocation2] sm:$0xff]
    %v49 = vld [vmem:[#allocation2 + $0x8] sm:$0xff]
    %v50 = vpack.c.bf16 %v49, %v48
    %v51 = vld [vmem:[#allocation5] sm:$0xf]
    %v52 = vld [vmem:[#allocation5 + $0x4] sm:$0xf]
    %v53 = vld [vmem:[#allocation5 + $0x8] sm:$0xf]
    %v54 = vld [vmem:[#allocation5 + $0xc] sm:$0xf]
    %v55 = vld [vmem:[%s2] sm:$0x1]
    %v57 = vperm.slane %v55, 0
    %v63 = vunpack.c.l.b16 %v51
    %v64 = vunpack.c.l.b16 %v52
    %v65 = vunpack.c.l.b16 %v53
    %v66 = vunpack.c.l.b16 %v54
    %v67 = vpack.c.b16 %v64, %v63
    %v68 = vpack.c.b16 %v66, %v65
    %vm69 = vcmask 261120
    %v71 = vsel %vm69, %v50, 0
    %v74 = vsel %vm69, %v67, 0
    %v77 = vsel %vm69, %v68, 0
    %79 = vmatpush.bf16.xpose.msra.mxu0 0
    %80 = vmatpush.bf16.xpose.msra.mxu0 0
    %81 = vmatpush.bf16.xpose.msra.mxu0 0
    %82 = vmatpush.bf16.xpose.msra.mxu0 0
    %83 = vmatpush.bf16.xpose.msra.mxu0 0
    %84 = vmatpush.bf16.xpose.msra.mxu0 0
    %85 = vmatpush.bf16.xpose.msra.mxu0 %v77
    %86 = vmatpush.bf16.xpose.msra.mxu0 %v74
    %87 = vmatmul.bf16.gmra.mxu0 %v71
    %v88 = vpop.f32.mrf.mxu0
    %v89 = vadd.f32 %v57, %v88
    %v90 = vpop.f32.mrf.mxu0
    %v91 = vadd.f32 %v57, %v90
    %92 = vdwg.mxu0
    %v93 = vpack.c.bf16 %v89, %v89
    %v94 = vpack.c.bf16 %v91, %v91
    %vm95 = vcmask 257024
    %96 = vst.msk [vmem:[#allocation7] sm:$0xf] %vm95, %v93
    %97 = vst.msk [vmem:[#allocation7 + $0x4] sm:$0xf] %vm95, %v94
    // Predicated region
    $region22: #{tpu_custom_call.1} parent=1 // pred_check
      _
    $region23: #{tpu_custom_call.1} parent=1 // pred_check_branch
      %99 = sbr.rel (0) target = $region25
    $region24: #{tpu_custom_call.1} parent=1 // pred_region
      %101 = vsyncadd [#allocation4], 0
      %s102 = sshll.u32 [#allocation7], 4
      %s103 = int_to_ptr.vmem [resolvable:$true] %s102
      %s104 = sshll.u32 %s3, 4
      %s105 = int_to_ptr.hbm [resolvable:$true] %s104
      %110 = dma.vmem_to_hbm [thread:$0]  %s103, 128, %s105, [#allocation4], 64, 64, 4
    $region25: #{tpu_custom_call.1} parent=1 // pred_fallthru
      _
    // Predicated region
    $region26: #{tpu_custom_call.1} parent=1 // pred_check
      _
    $region27: #{tpu_custom_call.1} parent=1 // pred_check_branch
      %112 = sbr.rel (0) target = $region29
    $region28: #{tpu_custom_call.1} parent=1 // pred_region
      %114 = dma.done [#allocation4], 128
    $region29: #{tpu_custom_call.1} parent=1 // pred_fallthru
      _
    %115 = vsyncpa [#allocation3], 1
    %116 = vsyncpa [#allocation6], 1
    %117 = vsyncpa [#allocation4], 1

</llo_original>
